<compile_context>
chip_gen: v5e
topology: v5e:2x2
jax: 0.10.0
libtpu: 0.0.40
codegen_flags: <defaults>
</compile_context>

<pallas_src>
import functools

import jax
import jax.numpy as jnp
from jax.experimental import pallas as pl
from jax.experimental.pallas import tpu as pltpu

_SUBLANE = 8


def _vmem_limit_bytes():
    """Scoped-VMEM budget for this kernel: ~half of physical VMEM (v7x-safe)."""
    cap = 64 * 1024 * 1024  # conservative default = v7x per-TensorCore VMEM
    try:
        info = pltpu.get_tpu_info()
        cap = int(getattr(info, "vmem_capacity_bytes", cap) or cap)
    except Exception:
        pass
    return int(min(cap // 2, 96 * 1024 * 1024))


def _choose_tile_rows(R, per_row_bytes, fixed_bytes, vmem_limit):
    """Largest row tile fitting the (double-buffered) VMEM budget.

    Prefers a multiple-of-8 divisor of R (no pad/slice HBM copies) and keeps
    ~>=8 grid steps so the grid can shard across v7x's two TensorCores.
    Returns (tile_rows, needs_pad).
    """
    budget = int(vmem_limit * 0.85) - fixed_bytes
    max_rows = max(_SUBLANE, budget // max(per_row_bytes, 1))
    if R <= max_rows and R < 64:
        return R, False  # tiny problem: one block == full first dim (always legal)
    cap = min(max_rows, max(_SUBLANE, -(-R // 8)))  # aim for >= ~8 grid steps
    t = (cap // _SUBLANE) * _SUBLANE
    while t >= _SUBLANE:
        if R % t == 0:
            return t, False
        t -= _SUBLANE
    # Fallback: no multiple-of-8 divisor of R fits -> pad (extra HBM pass, rare).
    t = max(_SUBLANE, (min(max_rows, 1024) // _SUBLANE) * _SUBLANE)
    return t, True


# ---------------------------------------------------------------------------
# Kernels
# ---------------------------------------------------------------------------

def _layernorm_kernel(x_ref, g_ref, b_ref, o_ref, *, eps):
    # x_ref: (TM, D) tile of rows; normalize each row over D (f32 in-register).
    x = x_ref[...].astype(jnp.float32)
    mean = jnp.mean(x, axis=-1, keepdims=True)
    xc = x - mean
    var = jnp.mean(xc * xc, axis=-1, keepdims=True)
    y = xc * jax.lax.rsqrt(var + eps)                       # rsqrt -> EUP slot
    g = g_ref[...].astype(jnp.float32)                      # (1, D)
    b = b_ref[...].astype(jnp.float32)                      # (1, D)
    o_ref[...] = (y * g + b).astype(o_ref.dtype)


def _prenorm_linear_kernel(x_ref, g_ref, b_ref, w_ref, o_ref, *, eps):
    # Fused PreNorm + Linear: o = LayerNorm(x) @ W, with W resident in VMEM.
    x = x_ref[...].astype(jnp.float32)                      # (TM, D)
    mean = jnp.mean(x, axis=-1, keepdims=True)
    xc = x - mean
    var = jnp.mean(xc * xc, axis=-1, keepdims=True)
    y = xc * jax.lax.rsqrt(var + eps)
    h = y * g_ref[...].astype(jnp.float32) + b_ref[...].astype(jnp.float32)
    w = w_ref[...]                                          # (D, E)
    o_ref[...] = jnp.dot(h.astype(w.dtype), w,
                         preferred_element_type=jnp.float32).astype(o_ref.dtype)


# ---------------------------------------------------------------------------
# Wrappers
# ---------------------------------------------------------------------------

def layernorm_pallas(x, gamma, beta, *, eps=1e-5):
    """LayerNorm over the last axis of x (..., D) in a single Pallas TPU kernel."""
    orig_shape = x.shape
    D = orig_shape[-1]
    x2 = x.reshape(-1, D)
    R = x2.shape[0]

    xb = jnp.dtype(x.dtype).itemsize
    per_row = 2 * D * xb + 2 * D * xb + 2 * 4 * D          # dbl-buf in/out + f32 temps
    fixed = 4 * 4 * D                                      # gamma/beta (dbl-buffered)
    vmem_limit = _vmem_limit_bytes()
    tile_rows, needs_pad = _choose_tile_rows(R, per_row, fixed, vmem_limit)

    if needs_pad:
        pad = (-R) % tile_rows
        x2 = jnp.pad(x2, ((0, pad), (0, 0)))
    Rp = x2.shape[0]

    gamma2 = gamma.reshape(1, D)
    beta2 = beta.reshape(1, D)

    out = pl.pallas_call(
        functools.partial(_layernorm_kernel, eps=eps),
        out_shape=jax.ShapeDtypeStruct((Rp, D), x.dtype),
        grid_spec=pltpu.PrefetchScalarGridSpec(
            num_scalar_prefetch=0,
            grid=(Rp // tile_rows,),
            in_specs=[
                pl.BlockSpec((tile_rows, D), lambda i: (i, 0)),
                pl.BlockSpec((1, D), lambda i: (0, 0)),
                pl.BlockSpec((1, D), lambda i: (0, 0)),
            ],
            out_specs=pl.BlockSpec((tile_rows, D), lambda i: (i, 0)),
        ),
        compiler_params=pltpu.CompilerParams(
            dimension_semantics=("parallel",),
            vmem_limit_bytes=vmem_limit,
        ),
    )(x2, gamma2, beta2)

    if needs_pad and Rp != R:
        out = out[:R]
    return out.reshape(orig_shape)


def prenorm_linear_pallas(x, gamma, beta, w, *, eps=1e-5):
    """Fused PreNorm where fn is a linear projection: (LayerNorm(x)) @ w."""
    orig_shape = x.shape
    D = orig_shape[-1]
    E = w.shape[-1]
    x2 = x.reshape(-1, D)
    R = x2.shape[0]

    xb = jnp.dtype(x.dtype).itemsize
    wb = jnp.dtype(w.dtype).itemsize
    per_row = 2 * D * xb + 2 * E * xb + 4 * D + 4 * E      # dbl-buf in/out + f32 temps
    fixed = 2 * D * E * wb + 4 * 4 * D                     # resident weight + gamma/beta
    vmem_limit = _vmem_limit_bytes()
    tile_rows, needs_pad = _choose_tile_rows(R, per_row, fixed, vmem_limit)

    if needs_pad:
        pad = (-R) % tile_rows
        x2 = jnp.pad(x2, ((0, pad), (0, 0)))
    Rp = x2.shape[0]

    gamma2 = gamma.reshape(1, D)
    beta2 = beta.reshape(1, D)

    out = pl.pallas_call(
        functools.partial(_prenorm_linear_kernel, eps=eps),
        out_shape=jax.ShapeDtypeStruct((Rp, E), x.dtype),
        grid_spec=pltpu.PrefetchScalarGridSpec(
            num_scalar_prefetch=0,
            grid=(Rp // tile_rows,),
            in_specs=[
                pl.BlockSpec((tile_rows, D), lambda i: (i, 0)),
                pl.BlockSpec((1, D), lambda i: (0, 0)),
                pl.BlockSpec((1, D), lambda i: (0, 0)),
                pl.BlockSpec((D, E), lambda i: (0, 0)),      # weight stays resident
            ],
            out_specs=pl.BlockSpec((tile_rows, E), lambda i: (i, 0)),
        ),
        compiler_params=pltpu.CompilerParams(
            dimension_semantics=("parallel",),
            vmem_limit_bytes=vmem_limit,
        ),
    )(x2, gamma2, beta2, w)

    if needs_pad and Rp != R:
        out = out[:R]
    return out.reshape(orig_shape[:-1] + (E,))


def prenorm_apply(x, gamma, beta, fn, **kwargs):
    """Generic PreNorm.forward: fn(LayerNorm(x), **kwargs) for arbitrary fn."""
    # TODO(synk): only the Linear `fn` is fused in-kernel (prenorm_linear_pallas);
    # arbitrary wrapped modules run as plain JAX after the LayerNorm kernel.
    return fn(layernorm_pallas(x, gamma, beta), **kwargs)


if __name__ == "__main__":
    key = jax.random.PRNGKey(0)
    kx, kg, kb, kw = jax.random.split(key, 4)

    # Lane-dense feature dim (multiple of 128) consistent with a transformer token dim.
    B, N, D = 2, 8, 128
    x = jax.random.normal(kx, (B, N, D), dtype=jnp.float32)

    # LayerNorm parameters (random, to exercise scale/shift).
    gamma = 1.0 + 0.1 * jax.random.normal(kg, (D,), dtype=jnp.float32)
    beta = 0.1 * jax.random.normal(kb, (D,), dtype=jnp.float32)

    # `fn` = deterministic linear projection (the common PreNorm case).
    W = jax.random.normal(kw, (D, D), dtype=jnp.float32) / jnp.sqrt(D)

    # Fused PreNorm + Linear (single kernel, no HBM round trip of LN(x)).
    out_fused = jax.block_until_ready(prenorm_linear_pallas(x, gamma, beta, W))

    # Generic path: standalone LayerNorm kernel, then arbitrary fn in plain JAX.
    fn = lambda h: jnp.einsum("bnd,de->bne", h, W)
    out_generic = jax.block_until_ready(prenorm_apply(x, gamma, beta, fn))

    # Reference (plain JAX).
    mean = jnp.mean(x, axis=-1, keepdims=True)
    var = jnp.mean((x - mean) ** 2, axis=-1, keepdims=True)
    ln_ref = (x - mean) / jnp.sqrt(var + 1e-5) * gamma + beta
    ref = fn(ln_ref)

    assert jnp.allclose(out_generic, ref, atol=1e-3, rtol=1e-3), "generic path mismatch"
    assert jnp.allclose(out_fused, ref, atol=1e-2, rtol=1e-2), "fused path mismatch"

    print("KERNEL_OK")
</pallas_src>

<mosaic_0001>
module attributes {stable_mosaic.version = 11 : i64} {
  func.func @_prenorm_linear_kernel(%arg0: i32, %arg1: memref<16x128xf32, #tpu.memory_space<vmem>>, %arg2: memref<1x128xf32, #tpu.memory_space<vmem>>, %arg3: memref<1x128xf32, #tpu.memory_space<vmem>>, %arg4: memref<128x128xf32, #tpu.memory_space<vmem>>, %arg5: memref<16x128xf32, #tpu.memory_space<vmem>>) attributes {dimension_semantics = [#tpu.dimension_semantics<parallel>], iteration_bounds = array<i64: 1>, scalar_prefetch = 0 : i64, scratch_operands = 0 : i64, tpu.core_type = #tpu.core_type<tc>, window_params = [{transform_indices = @transform_0, window_bounds = array<i64: 16, 128>}, {pipeline_mode = #tpu.pipeline_mode<synchronous>, transform_indices = @transform_1, window_bounds = array<i64: 1, 128>}, {pipeline_mode = #tpu.pipeline_mode<synchronous>, transform_indices = @transform_2, window_bounds = array<i64: 1, 128>}, {pipeline_mode = #tpu.pipeline_mode<synchronous>, transform_indices = @transform_3, window_bounds = array<i64: 128, 128>}, {transform_indices = @transform_4, window_bounds = array<i64: 16, 128>}]} {
    %c0 = arith.constant 0 : index
    %c0_0 = arith.constant 0 : index
    %0 = vector.load %arg1[%c0, %c0_0] : memref<16x128xf32, #tpu.memory_space<vmem>>, vector<16x128xf32>
    %cst = arith.constant dense<0.000000e+00> : vector<16xf32>
    %1 = vector.multi_reduction <add>, %0, %cst [1] : vector<16x128xf32> to vector<16xf32>
    %2 = vector.shape_cast %1 : vector<16xf32> to vector<16x1xf32>
    %cst_1 = arith.constant 1.280000e+02 : f32
    %3 = vector.broadcast %cst_1 : f32 to vector<16x1xf32>
    %4 = arith.divf %2, %3 : vector<16x1xf32>
    %5 = vector.broadcast %4 : vector<16x1xf32> to vector<16x128xf32>
    %6 = arith.subf %0, %5 : vector<16x128xf32>
    %7 = arith.mulf %6, %6 : vector<16x128xf32>
    %cst_2 = arith.constant dense<0.000000e+00> : vector<16xf32>
    %8 = vector.multi_reduction <add>, %7, %cst_2 [1] : vector<16x128xf32> to vector<16xf32>
    %9 = vector.shape_cast %8 : vector<16xf32> to vector<16x1xf32>
    %cst_3 = arith.constant 1.280000e+02 : f32
    %10 = vector.broadcast %cst_3 : f32 to vector<16x1xf32>
    %11 = arith.divf %9, %10 : vector<16x1xf32>
    %cst_4 = arith.constant 9.99999974E-6 : f32
    %12 = vector.broadcast %cst_4 : f32 to vector<16x1xf32>
    %13 = arith.addf %11, %12 : vector<16x1xf32>
    %14 = math.rsqrt %13 : vector<16x1xf32>
    %15 = vector.broadcast %14 : vector<16x1xf32> to vector<16x128xf32>
    %16 = arith.mulf %6, %15 : vector<16x128xf32>
    %c0_5 = arith.constant 0 : index
    %c0_6 = arith.constant 0 : index
    %17 = vector.load %arg2[%c0_5, %c0_6] : memref<1x128xf32, #tpu.memory_space<vmem>>, vector<1x128xf32>
    %18 = vector.broadcast %17 : vector<1x128xf32> to vector<16x128xf32>
    %19 = arith.mulf %16, %18 : vector<16x128xf32>
    %c0_7 = arith.constant 0 : index
    %c0_8 = arith.constant 0 : index
    %20 = vector.load %arg3[%c0_7, %c0_8] : memref<1x128xf32, #tpu.memory_space<vmem>>, vector<1x128xf32>
    %21 = vector.broadcast %20 : vector<1x128xf32> to vector<16x128xf32>
    %22 = arith.addf %19, %21 : vector<16x128xf32>
    %c0_9 = arith.constant 0 : index
    %c0_10 = arith.constant 0 : index
    %23 = vector.load %arg4[%c0_9, %c0_10] : memref<128x128xf32, #tpu.memory_space<vmem>>, vector<128x128xf32>
    %cst_11 = arith.constant dense<0.000000e+00> : vector<16x128xf32>
    %24 = tpu.matmul %22, %23, %cst_11 {dimension_numbers = #tpu.dot_dimension_numbers<[1], [0], [0], [1], [0, 0, 1, 1], [], []>} : vector<16x128xf32>, vector<128x128xf32>, vector<16x128xf32> -> vector<16x128xf32>
    %c0_12 = arith.constant 0 : index
    %c0_13 = arith.constant 0 : index
    %25 = vector.load %arg5[%c0_12, %c0_13] : memref<16x128xf32, #tpu.memory_space<vmem>>, vector<16x128xf32>
    tpu.vector_store %arg5[%c0_12, %c0_13], %24 {strides = array<i32>} : memref<16x128xf32, #tpu.memory_space<vmem>>, vector<16x128xf32>,
    return
  }
  func.func @transform_0(%arg0: i32) -> (i32, i32) {
    %c0_i32 = arith.constant 0 : i32
    %c0_i32_0 = arith.constant 0 : i32
    return %arg0, %c0_i32 : i32, i32
  }
  func.func @transform_1(%arg0: i32) -> (i32, i32) {
    %c0_i32 = arith.constant 0 : i32
    %c0_i32_0 = arith.constant 0 : i32
    %c0_i32_1 = arith.constant 0 : i32
    return %c0_i32, %c0_i32_0 : i32, i32
  }
  func.func @transform_2(%arg0: i32) -> (i32, i32) {
    %c0_i32 = arith.constant 0 : i32
    %c0_i32_0 = arith.constant 0 : i32
    %c0_i32_1 = arith.constant 0 : i32
    return %c0_i32, %c0_i32_0 : i32, i32
  }
  func.func @transform_3(%arg0: i32) -> (i32, i32) {
    %c0_i32 = arith.constant 0 : i32
    %c0_i32_0 = arith.constant 0 : i32
    %c0_i32_1 = arith.constant 0 : i32
    return %c0_i32, %c0_i32_0 : i32, i32
  }
  func.func @transform_4(%arg0: i32) -> (i32, i32) {
    %c0_i32 = arith.constant 0 : i32
    %c0_i32_0 = arith.constant 0 : i32
    return %arg0, %c0_i32 : i32, i32
  }
}

</mosaic_0001>

<llo_original>
// kernel: tpu_custom_call.1
$region0: #{tpu_custom_call.1}
  #allocation0 [shape = 'u32[]', space=smem, size = 0x4, offset = 0x4, fixed_abs, tag = 'smem constant byte address 0x4 - core index']
  #allocation1 [shape = 'u32[72,128]{1,0:T(1,128)}', space=vmem, size = 0x9000, scoped, tag = 'internal scratch']
  %s0 = inlined_call_operand.hbm [shape: f32[16,128], index: 0, kind: input, shape index: {}]
  %s1 = inlined_call_operand.hbm [shape: f32[1,128], index: 1, kind: input, shape index: {}]
  %s2 = inlined_call_operand.vmem [shape: f32[1,128], index: 2, kind: input, shape index: {}]
  %s3 = inlined_call_operand.hbm [shape: f32[128,128], index: 3, kind: input, shape index: {}]
  %s4 = inlined_call_operand.hbm [shape: f32[16,128], index: 4, kind: output, shape index: {}]
  %s5 = sld [smem:[#allocation0]]
  $region38: #{tpu_custom_call.1} parent=0
    _
  %s7 = ssub.s32 1, %s5
  %s8 = scalar_select 0, %s7, %s5
  $region1: #{tpu_custom_call.1} parent=0
    #allocation2 [shape = 'u8[8192]{0}', space=vmem, size = 0x2000, scoped, tag = 'input window, operand 0, single buffered']
    #allocation3 [shape = 's32[1]{0}', space=sflag, size = 0x4, scoped, tag = 'scoped memory for tpu_custom_call.1']
    #allocation4 [shape = 's32[1]{0}', space=sflag, size = 0x4, scoped, tag = 'scoped memory for tpu_custom_call.1']
    #allocation5 [shape = 'u8[512]{0}', space=vmem, size = 0x400, scoped, tag = 'input window, operand 1, single buffered']
    #allocation6 [shape = 's32[1]{0}', space=sflag, size = 0x4, scoped, tag = 'scoped memory for tpu_custom_call.1']
    #allocation7 [shape = 'u8[65536]{0}', space=vmem, size = 0x10000, scoped, tag = 'input window, operand 3, single buffered']
    #allocation8 [shape = 'u8[8192]{0}', space=vmem, size = 0x2000, scoped, tag = 'output window, operand 0, single buffered']
    %9 = vsyncpa [#allocation3], 0
    %10 = vsyncpa [#allocation6], 0
    %11 = vsyncpa [#allocation4], 0
    // Predicated region
    $region2: #{tpu_custom_call.1} parent=1 // pred_check
      _
    $region3: #{tpu_custom_call.1} parent=1 // pred_check_branch
      %13 = sbr.rel (0) target = $region5
    $region4: #{tpu_custom_call.1} parent=1 // pred_region
      %15 = vsyncadd [#allocation3], 0
      %s16 = sshll.u32 %s0, 4
      %s17 = int_to_ptr.hbm [resolvable:$true] %s16
      %s18 = sshll.u32 [#allocation2], 4
      %s19 = int_to_ptr.vmem [resolvable:$true] %s18
      %24 = dma.hbm_to_vmem [thread:$0]  %s17, 256, %s19, [#allocation3], 128, 128, 8
    $region5: #{tpu_custom_call.1} parent=1 // pred_fallthru
      _
    // Predicated region
    $region6: #{tpu_custom_call.1} parent=1 // pred_check
      _
    $region7: #{tpu_custom_call.1} parent=1 // pred_check_branch
      %26 = sbr.rel (0) target = $region9
    $region8: #{tpu_custom_call.1} parent=1 // pred_region
      %28 = vsyncadd [#allocation6], 0
      %s30 = sshll.u32 %s1, 4
      %s31 = int_to_ptr.hbm [resolvable:$true] %s30
      %s32 = sshll.u32 [#allocation5], 4
      %s33 = int_to_ptr.vmem [resolvable:$true] %s32
      %35 = dma.hbm_to_vmem [thread:$0]  %s31, 16, %s33, [#allocation6]
    $region9: #{tpu_custom_call.1} parent=1 // pred_fallthru
      _
    // Predicated region
    $region10: #{tpu_custom_call.1} parent=1 // pred_check
      _
    $region11: #{tpu_custom_call.1} parent=1 // pred_check_branch
      %37 = sbr.rel (0) target = $region13
    $region12: #{tpu_custom_call.1} parent=1 // pred_region
      _
    $region13: #{tpu_custom_call.1} parent=1 // pred_fallthru
      _
    // Predicated region
    $region14: #{tpu_custom_call.1} parent=1 // pred_check
      _
    $region15: #{tpu_custom_call.1} parent=1 // pred_check_branch
      %39 = sbr.rel (0) target = $region17
    $region16: #{tpu_custom_call.1} parent=1 // pred_region
      %41 = vsyncadd [#allocation6], 0
      %s42 = sshll.u32 %s3, 4
      %s43 = int_to_ptr.hbm [resolvable:$true] %s42
      %s44 = sshll.u32 [#allocation7], 4
      %s45 = int_to_ptr.vmem [resolvable:$true] %s44
      %50 = dma.hbm_to_vmem [thread:$0]  %s43, 2048, %s45, [#allocation6], 128, 128, 8
    $region17: #{tpu_custom_call.1} parent=1 // pred_fallthru
      _
    // Predicated region
    $region18: #{tpu_custom_call.1} parent=1 // pred_check
      _
    $region19: #{tpu_custom_call.1} parent=1 // pred_check_branch
      %52 = sbr.rel (0) target = $region21
    $region20: #{tpu_custom_call.1} parent=1 // pred_region
      %54 = dma.done [#allocation3], 256
    $region21: #{tpu_custom_call.1} parent=1 // pred_fallthru
      _
    // Predicated region
    $region22: #{tpu_custom_call.1} parent=1 // pred_check
      _
    $region23: #{tpu_custom_call.1} parent=1 // pred_check_branch
      %56 = sbr.rel (0) target = $region25
    $region24: #{tpu_custom_call.1} parent=1 // pred_region
      %58 = dma.done [#allocation6], 16
    $region25: #{tpu_custom_call.1} parent=1 // pred_fallthru
      _
    // Predicated region
    $region26: #{tpu_custom_call.1} parent=1 // pred_check
      _
    $region27: #{tpu_custom_call.1} parent=1 // pred_check_branch
      %60 = sbr.rel (0) target = $region29
    $region28: #{tpu_custom_call.1} parent=1 // pred_region
      %62 = dma.done [#allocation6], 2048
    $region29: #{tpu_custom_call.1} parent=1 // pred_fallthru
      _
    %v63 = vld [vmem:[#allocation2] sm:$0xff]
    %v64 = vld [vmem:[#allocation2 + $0x8] sm:$0xff]
    %65 = vadd.xlane.f32.xlu0 %v63
    %v66 = vpop.xlane.xlu0 %65
    %67 = vadd.xlane.f32.xlu0 %v64
    %v68 = vpop.xlane.xlu0 %67
    %v69 = vrcp.pop 128.0
    %v70 = vmul.f32 128.0, %v69
    %v71 = vsub.f32 1.0, %v70
    %v72 = vmul.f32 %v69, %v71
    %v73 = vadd.f32 %v69, %v72
    %vm74 = vweird.f32 %v69
    %v75 = vsel %vm74, %v69, %v73
    %v76 = vmul.f32 %v66, %v75
    %v77 = vmul.f32 %v68, %v75
    %v78 = vsub.f32 %v63, %v76
    %v79 = vsub.f32 %v64, %v77
    %v80 = vmul.f32 %v78, %v78
    %v81 = vmul.f32 %v79, %v79
    %82 = vadd.xlane.f32.xlu0 %v80
    %v83 = vpop.xlane.xlu0 %82
    %84 = vadd.xlane.f32.xlu0 %v81
    %v85 = vpop.xlane.xlu0 %84
    %v86 = vmul.f32 %v83, %v75
    %v87 = vmul.f32 %v85, %v75
    %v88 = vadd.f32 %v86, 1e-05
    %v89 = vadd.f32 %v87, 1e-05
    %v90 = vrsqrt.pop %v88
    %v91 = vmul.f32 %v90, %v88
    %v92 = vmul.f32 %v91, %v90
    %v93 = vmul.f32 0.5, %v92
    %v94 = vsub.f32 1.5, %v93
    %v95 = vmul.f32 %v90, %v94
    %vm96 = vweird.f32 %v88
    %vm97 = vweird.f32 %v90
    %vm98 = vmor %vm96, %vm97
    %v99 = vsel %vm98, %v90, %v95
    %v100 = vrsqrt.pop %v89
    %v101 = vmul.f32 %v100, %v89
    %v102 = vmul.f32 %v101, %v100
    %v103 = vmul.f32 0.5, %v102
    %v104 = vsub.f32 1.5, %v103
    %v105 = vmul.f32 %v100, %v104
    %vm106 = vweird.f32 %v89
    %vm107 = vweird.f32 %v100
    %vm108 = vmor %vm106, %vm107
    %v109 = vsel %vm108, %v100, %v105
    %v110 = vmul.f32 %v78, %v99
    %v111 = vmul.f32 %v79, %v109
    %v112 = vld [vmem:[#allocation5] sm:$0x1]
    %v114 = vperm.slane %v112, 0
    %v116 = vmul.f32 %v110, %v114
    %v117 = vmul.f32 %v111, %v114
    %v118 = vld [vmem:[%s2] sm:$0x1]
    %v120 = vperm.slane %v118, 0
    %v122 = vadd.f32 %v116, %v120
    %v123 = vadd.f32 %v117, %v120
    %v124 = vld [vmem:[#allocation7] sm:$0xff]
    %v125 = vld [vmem:[#allocation7 + $0x8] sm:$0xff]
    %v126 = vld [vmem:[#allocation7 + $0x10] sm:$0xff]
    %v127 = vld [vmem:[#allocation7 + $0x18] sm:$0xff]
    %v128 = vld [vmem:[#allocation7 + $0x20] sm:$0xff]
    %v129 = vld [vmem:[#allocation7 + $0x28] sm:$0xff]
    %v130 = vld [vmem:[#allocation7 + $0x30] sm:$0xff]
    %v131 = vld [vmem:[#allocation7 + $0x38] sm:$0xff]
    %v132 = vld [vmem:[#allocation7 + $0x40] sm:$0xff]
    %v133 = vld [vmem:[#allocation7 + $0x48] sm:$0xff]
    %v134 = vld [vmem:[#allocation7 + $0x50] sm:$0xff]
    %v135 = vld [vmem:[#allocation7 + $0x58] sm:$0xff]
    %v136 = vld [vmem:[#allocation7 + $0x60] sm:$0xff]
    %v137 = vld [vmem:[#allocation7 + $0x68] sm:$0xff]
    %v138 = vld [vmem:[#allocation7 + $0x70] sm:$0xff]
    %v139 = vld [vmem:[#allocation7 + $0x78] sm:$0xff]
    %140 = vmatpush.msra.mxu0 %v139
    %141 = vmatpush.msra.mxu0 %v138
    %142 = vmatpush.msra.mxu0 %v137
    %143 = vmatpush.msra.mxu0 %v136
    %144 = vmatpush.msra.mxu0 %v135
    %145 = vmatpush.msra.mxu0 %v134
    %146 = vmatpush.msra.mxu0 %v133
    %147 = vmatpush.msra.mxu0 %v132
    %148 = vmatpush.msra.mxu0 %v131
    %149 = vmatpush.msra.mxu0 %v130
    %150 = vmatpush.msra.mxu0 %v129
    %151 = vmatpush.msra.mxu0 %v128
    %152 = vmatpush.msra.mxu0 %v127
    %153 = vmatpush.msra.mxu0 %v126
    %154 = vmatpush.msra.mxu0 %v125
    %155 = vmatpush.msra.mxu0 %v124
    %156 = vmatmul.f32.gmra.mxu0 %v122
    %v157 = vpop.f32.mrf.mxu0
    %v158 = vadd.f32 0.0, %v157
    %159 = vmatmul.f32.gmra.mxu0 %v123
    %v160 = vpop.f32.mrf.mxu0
    %v161 = vadd.f32 0.0, %v160
    %162 = vdwg.mxu0
    %163 = vst [vmem:[#allocation8] sm:$0xff] %v158
    %164 = vst [vmem:[#allocation8 + $0x8] sm:$0xff] %v161
    // Predicated region
    $region30: #{tpu_custom_call.1} parent=1 // pred_check
      _
    $region31: #{tpu_custom_call.1} parent=1 // pred_check_branch
      %166 = sbr.rel (0) target = $region33
    $region32: #{tpu_custom_call.1} parent=1 // pred_region
      %168 = vsyncadd [#allocation4], 0
      %s169 = sshll.u32 [#allocation8], 4
      %s170 = int_to_ptr.vmem [resolvable:$true] %s169
      %s171 = sshll.u32 %s4, 4
      %s172 = int_to_ptr.hbm [resolvable:$true] %s171
      %177 = dma.vmem_to_hbm [thread:$0]  %s170, 256, %s172, [#allocation4], 128, 128, 8
    $region33: #{tpu_custom_call.1} parent=1 // pred_fallthru
      _
    // Predicated region
    $region34: #{tpu_custom_call.1} parent=1 // pred_check
      _
    $region35: #{tpu_custom_call.1} parent=1 // pred_check_branch
      %179 = sbr.rel (0) target = $region37
    $region36: #{tpu_custom_call.1} parent=1 // pred_region
      %181 = dma.done [#allocation4], 256
    $region37: #{tpu_custom_call.1} parent=1 // pred_fallthru
      _
    %182 = vsyncpa [#allocation3], 1
    %183 = vsyncpa [#allocation6], 1
    %184 = vsyncpa [#allocation4], 1

</llo_original>
